<compile_context>
chip_gen: v7x
topology: tpu7x:2x2x1
jax: 0.10.0
libtpu: 0.0.40
codegen_flags: <defaults>
</compile_context>

<pallas_src>
import functools

import jax
import jax.numpy as jnp
from jax.experimental import pallas as pl
from jax.experimental.pallas import tpu as pltpu


def mlp_kernel(x_ref,
               w1_ref, b1_ref,
               w2_ref, b2_ref,
               w3_ref, b3_ref,
               w4_ref, b4_ref,
               o_ref, *, n_chunks):
    """One batch tile. x is f32 (cast to bf16 in-kernel); W1..W3 bf16, MXU accumulates f32.

    The tile is processed as `n_chunks` independent row chunks so the two
    (v6e/v7x) or four (v5e) MXUs can be driven with independent dot chains.
    """
    tb = x_ref.shape[0]
    rows = tb // n_chunks

    for c in range(n_chunks):  # static unroll: independent chains -> MXU ILP
        rs = pl.ds(c * rows, rows)

        # In-kernel bf16 cast (VPU has slack under the MXU bound).
        x = x_ref[rs, :].astype(jnp.bfloat16)

        h = jnp.dot(x, w1_ref[...], preferred_element_type=jnp.float32) + b1_ref[...]
        h = jnp.maximum(h, 0.0)

        h = jnp.dot(h.astype(jnp.bfloat16), w2_ref[...],
                    preferred_element_type=jnp.float32) + b2_ref[...]
        h = jnp.maximum(h, 0.0)

        h = jnp.dot(h.astype(jnp.bfloat16), w3_ref[...],
                    preferred_element_type=jnp.float32) + b3_ref[...]
        h = jnp.maximum(h, 0.0)

        # Final (32 -> 1) layer on VPU + XLU reduce: an N=1 matmul would waste
        # ~all MXU lanes. w4_ref is the weight column laid out as a (1, 32) f32 row.
        h4 = jnp.sum(h * w4_ref[...], axis=-1, keepdims=True) + b4_ref[...]

        # TODO(synk): lane-dense output ((tb//128,128) slab) would save ~tb*1KiB of
        # lane-padded VMEM and masked stores, but needs a (tb,1)->(tb//128,128)
        # in-kernel relayout; skipped to keep lowering robust (output is tiny anyway).
        o_ref[rs, :] = h4.astype(o_ref.dtype)


def _vmem_capacity_bytes():
    try:
        info = pltpu.get_tpu_info()
        cap = getattr(info, "vmem_capacity_bytes", None)
        if cap:
            return int(cap)
    except Exception:
        pass
    return 64 * 1024 * 1024  # conservative (v7x-sized) fallback


def _pick_tile_b(B, D, vmem_limit_bytes):
    # Per-row VMEM footprint (bytes): f32 x tile (x2 buffers) + lane-padded (tb,1)
    # f32 output (x2 buffers) + f32/bf16 h1/h2/h3 intermediates  ~= 8*D + ~3.1KB.
    per_row = 8 * D + 4096
    tb = (vmem_limit_bytes // 2) // per_row   # keep ~half the limit as headroom
    tb = min(tb, 8192)                        # per-grid-step overhead already <1% here
    if B > 1024:
        tb = min(tb, -(-B // 2))              # grid >= 2 -> spans both v7x TensorCores
    tb = min(tb, B)
    tb = max(8, (tb // 8) * 8)                # sublane alignment
    return int(tb)


def prepare_params(params):
    """One-time conversion of f32 params to kernel layout/dtypes (do NOT redo per forward)."""
    return {
        "w1": params["w1"].astype(jnp.bfloat16),
        "b1": params["b1"].reshape(1, -1).astype(jnp.float32),
        "w2": params["w2"].astype(jnp.bfloat16),
        "b2": params["b2"].reshape(1, -1).astype(jnp.float32),
        "w3": params["w3"].astype(jnp.bfloat16),
        "b3": params["b3"].reshape(1, -1).astype(jnp.float32),
        # Explicit transpose of the (32, 1) column into a (1, 32) row for the VPU path.
        "w4": jnp.transpose(params["w4"]).astype(jnp.float32),
        "b4": params["b4"].reshape(1, 1).astype(jnp.float32),
    }


def mlp_forward(x, kparams, *, tile_b=None):
    """x: [B, D] float32; kparams: output of prepare_params(); returns [B, 1] float32."""
    B, D = x.shape
    w1, b1 = kparams["w1"], kparams["b1"]
    w2, b2 = kparams["w2"], kparams["b2"]
    w3, b3 = kparams["w3"], kparams["b3"]
    w4, b4 = kparams["w4"], kparams["b4"]
    assert w1.shape[0] == D, (w1.shape, D)

    vmem_cap = _vmem_capacity_bytes()
    vmem_limit = min(int(0.75 * vmem_cap), 96 * 1024 * 1024)

    if tile_b is None:
        tb = _pick_tile_b(B, D, vmem_limit)
    else:
        tb = max(8, (int(tile_b) // 8) * 8)

    padded_b = pl.cdiv(B, tb) * tb
    if padded_b != B:
        x = jnp.pad(x, ((0, padded_b - B), (0, 0)))
    grid = (padded_b // tb,)

    # Split the tile into two independent dot chains when it is large enough for
    # the split to matter (exposes ILP across the chip's MXUs).
    n_chunks = 2 if (tb >= 1024 and tb % 16 == 0) else 1

    def const_spec(shape):
        nd = len(shape)
        return pl.BlockSpec(shape, lambda i, _nd=nd: (0,) * _nd)

    in_specs = [
        pl.BlockSpec((tb, D), lambda i: (i, 0)),
        const_spec(w1.shape), const_spec(b1.shape),
        const_spec(w2.shape), const_spec(b2.shape),
        const_spec(w3.shape), const_spec(b3.shape),
        const_spec(w4.shape), const_spec(b4.shape),
    ]
    out_spec = pl.BlockSpec((tb, 1), lambda i: (i, 0))

    flops = 2 * padded_b * (D * 256 + 256 * 64 + 64 * 32 + 32 * 1)
    weight_bytes = 2 * (D * 256 + 256 * 64 + 64 * 32) + 4 * 32 + 4 * (256 + 64 + 32 + 1)
    bytes_accessed = padded_b * (4 * D + 4) + weight_bytes
    cost = pl.CostEstimate(flops=int(flops), transcendentals=0,
                           bytes_accessed=int(bytes_accessed))

    out = pl.pallas_call(
        functools.partial(mlp_kernel, n_chunks=n_chunks),
        out_shape=jax.ShapeDtypeStruct((padded_b, 1), jnp.float32),
        grid_spec=pltpu.PrefetchScalarGridSpec(
            num_scalar_prefetch=0,
            grid=grid,
            in_specs=in_specs,
            out_specs=out_spec,
        ),
        compiler_params=pltpu.CompilerParams(
            dimension_semantics=("parallel",),
            vmem_limit_bytes=vmem_limit,
        ),
        cost_estimate=cost,
    )(x, w1, b1, w2, b2, w3, b3, w4, b4)

    # Padded rows carry bias-propagated garbage; slice them off.
    return out[:B]


def init_params(key, input_dim):
    """Deterministic init mimicking nn.Linear default (uniform +/- 1/sqrt(fan_in))."""
    dims = [(input_dim, 256), (256, 64), (64, 32), (32, 1)]
    params = {}
    for i, (fan_in, fan_out) in enumerate(dims, start=1):
        key, kw, kb = jax.random.split(key, 3)
        bound = 1.0 / jnp.sqrt(float(fan_in))
        params[f"w{i}"] = jax.random.uniform(
            kw, (fan_in, fan_out), jnp.float32, -bound, bound)
        params[f"b{i}"] = jax.random.uniform(
            kb, (1, fan_out), jnp.float32, -bound, bound)
    return params


def mlp_reference(x, params):
    """Reference mirroring the kernel's mixed precision (bf16 matmuls, f32 accumulate).

    Note: bf16 feeds for x / W1-W3 are an intentional precision trade-off vs. the
    pure-f32 PyTorch module; error grows with D (layer-1 contraction length).
    """
    bf = jnp.bfloat16
    h = jnp.dot(x.astype(bf), params["w1"].astype(bf),
                preferred_element_type=jnp.float32) + params["b1"]
    h = jnp.maximum(h, 0.0)
    h = jnp.dot(h.astype(bf), params["w2"].astype(bf),
                preferred_element_type=jnp.float32) + params["b2"]
    h = jnp.maximum(h, 0.0)
    h = jnp.dot(h.astype(bf), params["w3"].astype(bf),
                preferred_element_type=jnp.float32) + params["b3"]
    h = jnp.maximum(h, 0.0)
    return jnp.dot(h, params["w4"].astype(jnp.float32)) + params["b4"]


if __name__ == "__main__":
    key = jax.random.PRNGKey(0)
    k_param, k_x = jax.random.split(key)

    batch = 8
    input_dim = 32

    params = init_params(k_param, input_dim)
    kparams = prepare_params(params)   # one-time layout/dtype conversion
    x = jax.random.normal(k_x, (batch, input_dim), jnp.float32)

    out = mlp_forward(x, kparams)
    out = jax.block_until_ready(out)

    ref = mlp_reference(x, params)
    assert out.shape == (batch, 1), out.shape
    assert jnp.allclose(out, ref, atol=2e-3, rtol=2e-3), "mismatch vs reference"

    print("KERNEL_OK")
</pallas_src>

<mosaic_0001>
module attributes {stable_mosaic.version = 11 : i64} {
  func.func @mlp_kernel(%arg0: i32, %arg1: memref<8x32xf32, #tpu.memory_space<vmem>>, %arg2: memref<32x256xbf16, #tpu.memory_space<vmem>>, %arg3: memref<1x256xf32, #tpu.memory_space<vmem>>, %arg4: memref<256x64xbf16, #tpu.memory_space<vmem>>, %arg5: memref<1x64xf32, #tpu.memory_space<vmem>>, %arg6: memref<64x32xbf16, #tpu.memory_space<vmem>>, %arg7: memref<1x32xf32, #tpu.memory_space<vmem>>, %arg8: memref<1x32xf32, #tpu.memory_space<vmem>>, %arg9: memref<1x1xf32, #tpu.memory_space<vmem>>, %arg10: memref<8x1xf32, #tpu.memory_space<vmem>>) attributes {dimension_semantics = [#tpu.dimension_semantics<parallel>], iteration_bounds = array<i64: 1>, scalar_prefetch = 0 : i64, scratch_operands = 0 : i64, tpu.core_type = #tpu.core_type<tc>, window_params = [{transform_indices = @transform_0, window_bounds = array<i64: 8, 32>}, {pipeline_mode = #tpu.pipeline_mode<synchronous>, transform_indices = @transform_1, window_bounds = array<i64: 32, 256>}, {pipeline_mode = #tpu.pipeline_mode<synchronous>, transform_indices = @transform_2, window_bounds = array<i64: 1, 256>}, {pipeline_mode = #tpu.pipeline_mode<synchronous>, transform_indices = @transform_3, window_bounds = array<i64: 256, 64>}, {pipeline_mode = #tpu.pipeline_mode<synchronous>, transform_indices = @transform_4, window_bounds = array<i64: 1, 64>}, {pipeline_mode = #tpu.pipeline_mode<synchronous>, transform_indices = @transform_5, window_bounds = array<i64: 64, 32>}, {pipeline_mode = #tpu.pipeline_mode<synchronous>, transform_indices = @transform_6, window_bounds = array<i64: 1, 32>}, {pipeline_mode = #tpu.pipeline_mode<synchronous>, transform_indices = @transform_7, window_bounds = array<i64: 1, 32>}, {pipeline_mode = #tpu.pipeline_mode<synchronous>, transform_indices = @transform_8, window_bounds = array<i64: 1, 1>}, {transform_indices = @transform_9, window_bounds = array<i64: 8, 1>}]} {
    %c0 = arith.constant 0 : index
    %c0_0 = arith.constant 0 : index
    %0 = vector.load %arg1[%c0, %c0_0] : memref<8x32xf32, #tpu.memory_space<vmem>>, vector<8x32xf32>
    %1 = arith.truncf %0 : vector<8x32xf32> to vector<8x32xbf16>
    %c0_1 = arith.constant 0 : index
    %c0_2 = arith.constant 0 : index
    %2 = vector.load %arg2[%c0_1, %c0_2] : memref<32x256xbf16, #tpu.memory_space<vmem>>, vector<32x256xbf16>
    %cst = arith.constant dense<0.000000e+00> : vector<8x256xf32>
    %3 = tpu.matmul %1, %2, %cst {dimension_numbers = #tpu.dot_dimension_numbers<[1], [0], [0], [1], [0, 0, 1, 1], [], []>} : vector<8x32xbf16>, vector<32x256xbf16>, vector<8x256xf32> -> vector<8x256xf32>
    %c0_3 = arith.constant 0 : index
    %c0_4 = arith.constant 0 : index
    %4 = vector.load %arg3[%c0_3, %c0_4] : memref<1x256xf32, #tpu.memory_space<vmem>>, vector<1x256xf32>
    %5 = vector.broadcast %4 : vector<1x256xf32> to vector<8x256xf32>
    %6 = arith.addf %3, %5 : vector<8x256xf32>
    %cst_5 = arith.constant 0.000000e+00 : f32
    %7 = vector.broadcast %cst_5 : f32 to vector<8x256xf32>
    %8 = arith.maximumf %6, %7 : vector<8x256xf32>
    %9 = arith.truncf %8 : vector<8x256xf32> to vector<8x256xbf16>
    %c0_6 = arith.constant 0 : index
    %c0_7 = arith.constant 0 : index
    %10 = vector.load %arg4[%c0_6, %c0_7] : memref<256x64xbf16, #tpu.memory_space<vmem>>, vector<256x64xbf16>
    %cst_8 = arith.constant dense<0.000000e+00> : vector<8x64xf32>
    %11 = tpu.matmul %9, %10, %cst_8 {dimension_numbers = #tpu.dot_dimension_numbers<[1], [0], [0], [1], [0, 0, 1, 1], [], []>} : vector<8x256xbf16>, vector<256x64xbf16>, vector<8x64xf32> -> vector<8x64xf32>
    %c0_9 = arith.constant 0 : index
    %c0_10 = arith.constant 0 : index
    %12 = vector.load %arg5[%c0_9, %c0_10] : memref<1x64xf32, #tpu.memory_space<vmem>>, vector<1x64xf32>
    %13 = vector.broadcast %12 : vector<1x64xf32> to vector<8x64xf32>
    %14 = arith.addf %11, %13 : vector<8x64xf32>
    %cst_11 = arith.constant 0.000000e+00 : f32
    %15 = vector.broadcast %cst_11 : f32 to vector<8x64xf32>
    %16 = arith.maximumf %14, %15 : vector<8x64xf32>
    %17 = arith.truncf %16 : vector<8x64xf32> to vector<8x64xbf16>
    %c0_12 = arith.constant 0 : index
    %c0_13 = arith.constant 0 : index
    %18 = vector.load %arg6[%c0_12, %c0_13] : memref<64x32xbf16, #tpu.memory_space<vmem>>, vector<64x32xbf16>
    %cst_14 = arith.constant dense<0.000000e+00> : vector<8x32xf32>
    %19 = tpu.matmul %17, %18, %cst_14 {dimension_numbers = #tpu.dot_dimension_numbers<[1], [0], [0], [1], [0, 0, 1, 1], [], []>} : vector<8x64xbf16>, vector<64x32xbf16>, vector<8x32xf32> -> vector<8x32xf32>
    %c0_15 = arith.constant 0 : index
    %c0_16 = arith.constant 0 : index
    %20 = vector.load %arg7[%c0_15, %c0_16] : memref<1x32xf32, #tpu.memory_space<vmem>>, vector<1x32xf32>
    %21 = vector.broadcast %20 : vector<1x32xf32> to vector<8x32xf32>
    %22 = arith.addf %19, %21 : vector<8x32xf32>
    %cst_17 = arith.constant 0.000000e+00 : f32
    %23 = vector.broadcast %cst_17 : f32 to vector<8x32xf32>
    %24 = arith.maximumf %22, %23 : vector<8x32xf32>
    %c0_18 = arith.constant 0 : index
    %c0_19 = arith.constant 0 : index
    %25 = vector.load %arg8[%c0_18, %c0_19] : memref<1x32xf32, #tpu.memory_space<vmem>>, vector<1x32xf32>
    %26 = vector.broadcast %25 : vector<1x32xf32> to vector<8x32xf32>
    %27 = arith.mulf %24, %26 : vector<8x32xf32>
    %cst_20 = arith.constant dense<0.000000e+00> : vector<8xf32>
    %28 = vector.multi_reduction <add>, %27, %cst_20 [1] : vector<8x32xf32> to vector<8xf32>
    %29 = vector.shape_cast %28 : vector<8xf32> to vector<8x1xf32>
    %c0_21 = arith.constant 0 : index
    %c0_22 = arith.constant 0 : index
    %30 = vector.load %arg9[%c0_21, %c0_22] : memref<1x1xf32, #tpu.memory_space<vmem>>, vector<1x1xf32>
    %31 = vector.broadcast %30 : vector<1x1xf32> to vector<8x1xf32>
    %32 = arith.addf %29, %31 : vector<8x1xf32>
    %c0_23 = arith.constant 0 : index
    %c0_24 = arith.constant 0 : index
    %33 = vector.load %arg10[%c0_23, %c0_24] : memref<8x1xf32, #tpu.memory_space<vmem>>, vector<8x1xf32>
    tpu.vector_store %arg10[%c0_23, %c0_24], %32 {strides = array<i32>} : memref<8x1xf32, #tpu.memory_space<vmem>>, vector<8x1xf32>,
    return
  }
  func.func @transform_0(%arg0: i32) -> (i32, i32) {
    %c0_i32 = arith.constant 0 : i32
    %c0_i32_0 = arith.constant 0 : i32
    return %arg0, %c0_i32 : i32, i32
  }
  func.func @transform_1(%arg0: i32) -> (i32, i32) {
    %c0_i32 = arith.constant 0 : i32
    %c0_i32_0 = arith.constant 0 : i32
    %c0_i32_1 = arith.constant 0 : i32
    return %c0_i32, %c0_i32_0 : i32, i32
  }
  func.func @transform_2(%arg0: i32) -> (i32, i32) {
    %c0_i32 = arith.constant 0 : i32
    %c0_i32_0 = arith.constant 0 : i32
    %c0_i32_1 = arith.constant 0 : i32
    return %c0_i32, %c0_i32_0 : i32, i32
  }
  func.func @transform_3(%arg0: i32) -> (i32, i32) {
    %c0_i32 = arith.constant 0 : i32
    %c0_i32_0 = arith.constant 0 : i32
    %c0_i32_1 = arith.constant 0 : i32
    return %c0_i32, %c0_i32_0 : i32, i32
  }
  func.func @transform_4(%arg0: i32) -> (i32, i32) {
    %c0_i32 = arith.constant 0 : i32
    %c0_i32_0 = arith.constant 0 : i32
    %c0_i32_1 = arith.constant 0 : i32
    return %c0_i32, %c0_i32_0 : i32, i32
  }
  func.func @transform_5(%arg0: i32) -> (i32, i32) {
    %c0_i32 = arith.constant 0 : i32
    %c0_i32_0 = arith.constant 0 : i32
    %c0_i32_1 = arith.constant 0 : i32
    return %c0_i32, %c0_i32_0 : i32, i32
  }
  func.func @transform_6(%arg0: i32) -> (i32, i32) {
    %c0_i32 = arith.constant 0 : i32
    %c0_i32_0 = arith.constant 0 : i32
    %c0_i32_1 = arith.constant 0 : i32
    return %c0_i32, %c0_i32_0 : i32, i32
  }
  func.func @transform_7(%arg0: i32) -> (i32, i32) {
    %c0_i32 = arith.constant 0 : i32
    %c0_i32_0 = arith.constant 0 : i32
    %c0_i32_1 = arith.constant 0 : i32
    return %c0_i32, %c0_i32_0 : i32, i32
  }
  func.func @transform_8(%arg0: i32) -> (i32, i32) {
    %c0_i32 = arith.constant 0 : i32
    %c0_i32_0 = arith.constant 0 : i32
    %c0_i32_1 = arith.constant 0 : i32
    return %c0_i32, %c0_i32_0 : i32, i32
  }
  func.func @transform_9(%arg0: i32) -> (i32, i32) {
    %c0_i32 = arith.constant 0 : i32
    %c0_i32_0 = arith.constant 0 : i32
    return %arg0, %c0_i32 : i32, i32
  }
}

</mosaic_0001>

<llo_original>
// kernel: tpu_custom_call.1
$region0: #{tpu_custom_call.1}
  #allocation0 [shape = 'u32[]', space=smem, size = 0x4, offset = 0x4, fixed_abs, tag = 'smem constant byte address 0x4 - core index']
  #allocation1 [shape = 'u32[144,128]{1,0:T(1,128)}', space=vmem, size = 0x12000, scoped, tag = 'internal scratch']
  #allocation2 [shape = 'f32[1,1]{1,0:T(1,128)S(1)}', space=vmem, size = 0x200, scoped, tag = 'scoped memory for tpu_custom_call.1']
  %s0 = inlined_call_operand.vmem [shape: f32[8,32], index: 0, kind: input, shape index: {}]
  %s1 = inlined_call_operand.vmem [shape: bf16[32,256], index: 1, kind: input, shape index: {}]
  %s2 = inlined_call_operand.vmem [shape: f32[1,256], index: 2, kind: input, shape index: {}]
  %s3 = inlined_call_operand.vmem [shape: bf16[256,64], index: 3, kind: input, shape index: {}]
  %s4 = inlined_call_operand.vmem [shape: f32[1,64], index: 4, kind: input, shape index: {}]
  %s5 = inlined_call_operand.vmem [shape: bf16[64,32], index: 5, kind: input, shape index: {}]
  %s6 = inlined_call_operand.vmem [shape: f32[1,32], index: 6, kind: input, shape index: {}]
  %s7 = inlined_call_operand.vmem [shape: f32[1,32], index: 7, kind: input, shape index: {}]
  %s8 = inlined_call_operand.<no memory space> [shape: f32[1,1], index: 8, kind: input, shape index: {}]
  %s9 = inlined_call_operand.vmem [shape: f32[8,1], index: 9, kind: output, shape index: {}]
  %s10 = sld [smem:[#allocation0]]
  $region46: #{tpu_custom_call.1} parent=0
    _
  %s12 = ssub.s32 1, %s10
  %s13 = scalar_select 0, %s12, %s10
  %v14 = vstv %s8
  %15 = vst [vmem:[#allocation2] sm:$0x1] %v14
  // Predicated region
  $region2: #{tpu_custom_call.1} parent=0 // pred_check
    _
  $region3: #{tpu_custom_call.1} parent=0 // pred_check_branch
    %17 = sbr.rel (0) target = $region5
  $region4: #{tpu_custom_call.1} parent=0 // pred_region
    _
  $region5: #{tpu_custom_call.1} parent=0 // pred_fallthru
    _
  // Predicated region
  $region6: #{tpu_custom_call.1} parent=0 // pred_check
    _
  $region7: #{tpu_custom_call.1} parent=0 // pred_check_branch
    %19 = sbr.rel (0) target = $region9
  $region8: #{tpu_custom_call.1} parent=0 // pred_region
    _
  $region9: #{tpu_custom_call.1} parent=0 // pred_fallthru
    _
  // Predicated region
  $region10: #{tpu_custom_call.1} parent=0 // pred_check
    _
  $region11: #{tpu_custom_call.1} parent=0 // pred_check_branch
    %21 = sbr.rel (0) target = $region13
  $region12: #{tpu_custom_call.1} parent=0 // pred_region
    _
  $region13: #{tpu_custom_call.1} parent=0 // pred_fallthru
    _
  // Predicated region
  $region14: #{tpu_custom_call.1} parent=0 // pred_check
    _
  $region15: #{tpu_custom_call.1} parent=0 // pred_check_branch
    %23 = sbr.rel (0) target = $region17
  $region16: #{tpu_custom_call.1} parent=0 // pred_region
    _
  $region17: #{tpu_custom_call.1} parent=0 // pred_fallthru
    _
  // Predicated region
  $region18: #{tpu_custom_call.1} parent=0 // pred_check
    _
  $region19: #{tpu_custom_call.1} parent=0 // pred_check_branch
    %25 = sbr.rel (0) target = $region21
  $region20: #{tpu_custom_call.1} parent=0 // pred_region
    _
  $region21: #{tpu_custom_call.1} parent=0 // pred_fallthru
    _
  // Predicated region
  $region22: #{tpu_custom_call.1} parent=0 // pred_check
    _
  $region23: #{tpu_custom_call.1} parent=0 // pred_check_branch
    %27 = sbr.rel (0) target = $region25
  $region24: #{tpu_custom_call.1} parent=0 // pred_region
    _
  $region25: #{tpu_custom_call.1} parent=0 // pred_fallthru
    _
  // Predicated region
  $region26: #{tpu_custom_call.1} parent=0 // pred_check
    _
  $region27: #{tpu_custom_call.1} parent=0 // pred_check_branch
    %29 = sbr.rel (0) target = $region29
  $region28: #{tpu_custom_call.1} parent=0 // pred_region
    _
  $region29: #{tpu_custom_call.1} parent=0 // pred_fallthru
    _
  // Predicated region
  $region30: #{tpu_custom_call.1} parent=0 // pred_check
    _
  $region31: #{tpu_custom_call.1} parent=0 // pred_check_branch
    %31 = sbr.rel (0) target = $region33
  $region32: #{tpu_custom_call.1} parent=0 // pred_region
    _
  $region33: #{tpu_custom_call.1} parent=0 // pred_fallthru
    _
  // Predicated region
  $region34: #{tpu_custom_call.1} parent=0 // pred_check
    _
  $region35: #{tpu_custom_call.1} parent=0 // pred_check_branch
    %33 = sbr.rel (0) target = $region37
  $region36: #{tpu_custom_call.1} parent=0 // pred_region
    _
  $region37: #{tpu_custom_call.1} parent=0 // pred_fallthru
    _
  %v35 = vld [vmem:[%s0] sm:$0xff]
  %v36 = vpack.c.bf16 %v35, %v35
  %v37 = vld [vmem:[%s1] sm:$0xff]
  %v38 = vld [vmem:[%s1 + $0x8] sm:$0xff]
  %v39 = vld [vmem:[%s1 + $0x10] sm:$0xff]
  %v40 = vld [vmem:[%s1 + $0x18] sm:$0xff]
  %v41 = vld [vmem:[%s2] sm:$0x3]
  %v43 = vlaneseq
  %v44 = vshrl.u32 %v43, 7
  %v45 = vsub.s32 0, %v44
  %v46 = vrot.slane %v41, %v45
  %v47 = vlaneseq
  %v48 = vshrl.u32 %v47, 7
  %v49 = vsub.s32 1, %v48
  %v50 = vrot.slane %v41, %v49
  %v57 = vunpack.c.l.b16 %v37
  %v58 = vunpack.c.h.b16 %v37
  %v59 = vunpack.c.l.b16 %v38
  %v60 = vunpack.c.h.b16 %v38
  %v61 = vunpack.c.l.b16 %v39
  %v62 = vunpack.c.h.b16 %v39
  %v63 = vunpack.c.l.b16 %v40
  %v64 = vunpack.c.h.b16 %v40
  %v65 = vpack.c.b16 %v59, %v57
  %v66 = vpack.c.b16 %v60, %v58
  %v67 = vpack.c.b16 %v63, %v61
  %v68 = vpack.c.b16 %v64, %v62
  %vm73 = vcmask 261120
  %v75 = vsel %vm73, %v36, 0
  %77 = vmatprep.subr.bf16.mxu0 %v66
  %78 = vmatpush1.bf16.msra.mxu0 %v65
  %79 = vmatprep.subr.bf16.mxu0 %v68
  %80 = vmatpush1.bf16.msra.mxu0 %v67
  %81 = vmatprep.subr.bf16.mxu0 0
  %82 = vmatpush1.bf16.msra.mxu0 0
  %83 = vmatprep.subr.bf16.mxu0 0
  %84 = vmatpush1.bf16.msra.mxu0 0
  %85 = vmatprep.subr.bf16.mxu0 0
  %86 = vmatpush1.bf16.msra.mxu0 0
  %87 = vmatprep.subr.bf16.mxu0 0
  %88 = vmatpush1.bf16.msra.mxu0 0
  %89 = vmatprep.subr.bf16.mxu0 0
  %90 = vmatpush1.bf16.msra.mxu0 0
  %91 = vmatprep.subr.bf16.mxu0 0
  %92 = vmatpush1.bf16.msra.mxu0 0
  %93 = vmatprep.subr.bf16.mxu0 0
  %94 = vmatpush1.bf16.msra.mxu0 0
  %95 = vmatprep.subr.bf16.mxu0 0
  %96 = vmatpush1.bf16.msra.mxu0 0
  %97 = vmatprep.subr.bf16.mxu0 0
  %98 = vmatpush1.bf16.msra.mxu0 0
  %99 = vmatprep.subr.bf16.mxu0 0
  %100 = vmatpush1.bf16.msra.mxu0 0
  %101 = vmatprep.subr.bf16.mxu0 0
  %102 = vmatpush1.bf16.msra.mxu0 0
  %103 = vmatprep.subr.bf16.mxu0 0
  %104 = vmatpush1.bf16.msra.mxu0 0
  %105 = vmatprep.subr.bf16.mxu0 0
  %106 = vmatpush1.bf16.msra.mxu0 0
  %107 = vmatprep.subr.bf16.mxu0 0
  %108 = vmatpush1.bf16.msra.mxu0 0
  %109 = vmatprep.mubr.bf16.mxu0 0
  %110 = vmatmul.mubr.bf16.gmra.mrb[0].mxu0 %v75
  %v111 = vpop.f32.mrb[0].mxu0
  %v112 = vadd.f32 %v46, %v111
  %v113 = vpop.f32.mrb[0].mxu0
  %v114 = vadd.f32 %v50, %v113
  %v115 = vpop.f32.mrb[0].mxu0
  %v116 = vpop.f32.mrb[0].mxu0
  %117 = vdwg.mxu0
  %v118 = vmax.f32 %v112, 0.0
  %v119 = vmax.f32 %v114, 0.0
  %v120 = vpack.c.bf16 %v118, %v118
  %v121 = vpack.c.bf16 %v119, %v119
  %v122 = vld [vmem:[%s3] sm:$0xf]
  %v123 = vld [vmem:[%s3 + $0x4] sm:$0xf]
  %v124 = vld [vmem:[%s3 + $0x8] sm:$0xf]
  %v125 = vld [vmem:[%s3 + $0xc] sm:$0xf]
  %v126 = vld [vmem:[%s3 + $0x10] sm:$0xf]
  %v127 = vld [vmem:[%s3 + $0x14] sm:$0xf]
  %v128 = vld [vmem:[%s3 + $0x18] sm:$0xf]
  %v129 = vld [vmem:[%s3 + $0x1c] sm:$0xf]
  %v130 = vld [vmem:[%s3 + $0x20] sm:$0xf]
  %v131 = vld [vmem:[%s3 + $0x24] sm:$0xf]
  %v132 = vld [vmem:[%s3 + $0x28] sm:$0xf]
  %v133 = vld [vmem:[%s3 + $0x2c] sm:$0xf]
  %v134 = vld [vmem:[%s3 + $0x30] sm:$0xf]
  %v135 = vld [vmem:[%s3 + $0x34] sm:$0xf]
  %v136 = vld [vmem:[%s3 + $0x38] sm:$0xf]
  %v137 = vld [vmem:[%s3 + $0x3c] sm:$0xf]
  %v138 = vld [vmem:[%s3 + $0x40] sm:$0xf]
  %v139 = vld [vmem:[%s3 + $0x44] sm:$0xf]
  %v140 = vld [vmem:[%s3 + $0x48] sm:$0xf]
  %v141 = vld [vmem:[%s3 + $0x4c] sm:$0xf]
  %v142 = vld [vmem:[%s3 + $0x50] sm:$0xf]
  %v143 = vld [vmem:[%s3 + $0x54] sm:$0xf]
  %v144 = vld [vmem:[%s3 + $0x58] sm:$0xf]
  %v145 = vld [vmem:[%s3 + $0x5c] sm:$0xf]
  %v146 = vld [vmem:[%s3 + $0x60] sm:$0xf]
  %v147 = vld [vmem:[%s3 + $0x64] sm:$0xf]
  %v148 = vld [vmem:[%s3 + $0x68] sm:$0xf]
  %v149 = vld [vmem:[%s3 + $0x6c] sm:$0xf]
  %v150 = vld [vmem:[%s3 + $0x70] sm:$0xf]
  %v151 = vld [vmem:[%s3 + $0x74] sm:$0xf]
  %v152 = vld [vmem:[%s3 + $0x78] sm:$0xf]
  %v153 = vld [vmem:[%s3 + $0x7c] sm:$0xf]
  %v154 = vld [vmem:[%s4] sm:$0x1]
  %v156 = vlaneseq
  %v157 = vshrl.u32 %v156, 7
  %v158 = vsub.s32 0, %v157
  %v159 = vrot.slane %v154, %v158
  %v193 = vunpack.c.l.b16 %v122
  %v194 = vunpack.c.l.b16 %v123
  %v195 = vunpack.c.l.b16 %v124
  %v196 = vunpack.c.l.b16 %v125
  %v197 = vunpack.c.l.b16 %v126
  %v198 = vunpack.c.l.b16 %v127
  %v199 = vunpack.c.l.b16 %v128
  %v200 = vunpack.c.l.b16 %v129
  %v201 = vunpack.c.l.b16 %v130
  %v202 = vunpack.c.l.b16 %v131
  %v203 = vunpack.c.l.b16 %v132
  %v204 = vunpack.c.l.b16 %v133
  %v205 = vunpack.c.l.b16 %v134
  %v206 = vunpack.c.l.b16 %v135
  %v207 = vunpack.c.l.b16 %v136
  %v208 = vunpack.c.l.b16 %v137
  %v209 = vunpack.c.l.b16 %v138
  %v210 = vunpack.c.l.b16 %v139
  %v211 = vunpack.c.l.b16 %v140
  %v212 = vunpack.c.l.b16 %v141
  %v213 = vunpack.c.l.b16 %v142
  %v214 = vunpack.c.l.b16 %v143
  %v215 = vunpack.c.l.b16 %v144
  %v216 = vunpack.c.l.b16 %v145
  %v217 = vunpack.c.l.b16 %v146
  %v218 = vunpack.c.l.b16 %v147
  %v219 = vunpack.c.l.b16 %v148
  %v220 = vunpack.c.l.b16 %v149
  %v221 = vunpack.c.l.b16 %v150
  %v222 = vunpack.c.l.b16 %v151
  %v223 = vunpack.c.l.b16 %v152
  %v224 = vunpack.c.l.b16 %v153
  %v225 = vpack.c.b16 %v194, %v193
  %v226 = vpack.c.b16 %v196, %v195
  %v227 = vpack.c.b16 %v198, %v197
  %v228 = vpack.c.b16 %v200, %v199
  %v229 = vpack.c.b16 %v202, %v201
  %v230 = vpack.c.b16 %v204, %v203
  %v231 = vpack.c.b16 %v206, %v205
  %v232 = vpack.c.b16 %v208, %v207
  %v233 = vpack.c.b16 %v210, %v209
  %v234 = vpack.c.b16 %v212, %v211
  %v235 = vpack.c.b16 %v214, %v213
  %v236 = vpack.c.b16 %v216, %v215
  %v237 = vpack.c.b16 %v218, %v217
  %v238 = vpack.c.b16 %v220, %v219
  %v239 = vpack.c.b16 %v222, %v221
  %v240 = vpack.c.b16 %v224, %v223
  %257 = vmatprep.subr.bf16.mxu0 0
  %258 = vmatpush1.bf16.msra.mxu0 %v225
  %259 = vmatprep.subr.bf16.mxu0 0
  %260 = vmatpush1.bf16.msra.mxu0 %v226
  %261 = vmatprep.subr.bf16.mxu0 0
  %262 = vmatpush1.bf16.msra.mxu0 %v227
  %263 = vmatprep.subr.bf16.mxu0 0
  %264 = vmatpush1.bf16.msra.mxu0 %v228
  %265 = vmatprep.subr.bf16.mxu0 0
  %266 = vmatpush1.bf16.msra.mxu0 %v229
  %267 = vmatprep.subr.bf16.mxu0 0
  %268 = vmatpush1.bf16.msra.mxu0 %v230
  %269 = vmatprep.subr.bf16.mxu0 0
  %270 = vmatpush1.bf16.msra.mxu0 %v231
  %271 = vmatprep.subr.bf16.mxu0 0
  %272 = vmatpush1.bf16.msra.mxu0 %v232
  %273 = vmatprep.subr.bf16.mxu0 0
  %274 = vmatpush1.bf16.msra.mxu0 %v233
  %275 = vmatprep.subr.bf16.mxu0 0
  %276 = vmatpush1.bf16.msra.mxu0 %v234
  %277 = vmatprep.subr.bf16.mxu0 0
  %278 = vmatpush1.bf16.msra.mxu0 %v235
  %279 = vmatprep.subr.bf16.mxu0 0
  %280 = vmatpush1.bf16.msra.mxu0 %v236
  %281 = vmatprep.subr.bf16.mxu0 0
  %282 = vmatpush1.bf16.msra.mxu0 %v237
  %283 = vmatprep.subr.bf16.mxu0 0
  %284 = vmatpush1.bf16.msra.mxu0 %v238
  %285 = vmatprep.subr.bf16.mxu0 0
  %286 = vmatpush1.bf16.msra.mxu0 %v239
  %287 = vmatprep.subr.bf16.mxu0 0
  %288 = vmatpush1.bf16.msra.mxu0 %v240
  %289 = vmatprep.mubr.bf16.mxu0 %v121
  %290 = vmatmul.mubr.bf16.gmra.mrb[0].mxu0 %v120
  %v291 = vpop.f32.mrb[0].mxu0
  %v292 = vadd.f32 %v159, %v291
  %v293 = vpop.f32.mrb[0].mxu0
  %v294 = vpop.f32.mrb[0].mxu0
  %v295 = vpop.f32.mrb[0].mxu0
  %296 = vdwg.mxu0
  %v297 = vmax.f32 %v292, 0.0
  %v298 = vpack.c.bf16 %v297, %v297
  %v299 = vld [vmem:[%s5] sm:$0xf]
  %v300 = vld [vmem:[%s5 + $0x4] sm:$0xf]
  %v301 = vld [vmem:[%s5 + $0x8] sm:$0xf]
  %v302 = vld [vmem:[%s5 + $0xc] sm:$0xf]
  %v303 = vld [vmem:[%s5 + $0x10] sm:$0xf]
  %v304 = vld [vmem:[%s5 + $0x14] sm:$0xf]
  %v305 = vld [vmem:[%s5 + $0x18] sm:$0xf]
  %v306 = vld [vmem:[%s5 + $0x1c] sm:$0xf]
  %v307 = vld [vmem:[%s6] sm:$0x1]
  %v309 = vlaneseq
  %v310 = vshrl.u32 %v309, 7
  %v311 = vsub.s32 0, %v310
  %v312 = vrot.slane %v307, %v311
  %v322 = vunpack.c.l.b16 %v299
  %v323 = vunpack.c.l.b16 %v300
  %v324 = vunpack.c.l.b16 %v301
  %v325 = vunpack.c.l.b16 %v302
  %v326 = vunpack.c.l.b16 %v303
  %v327 = vunpack.c.l.b16 %v304
  %v328 = vunpack.c.l.b16 %v305
  %v329 = vunpack.c.l.b16 %v306
  %v330 = vpack.c.b16 %v323, %v322
  %v331 = vpack.c.b16 %v325, %v324
  %v332 = vpack.c.b16 %v327, %v326
  %v333 = vpack.c.b16 %v329, %v328
  %vm338 = vcmask 523264
  %v340 = vsel %vm338, %v298, 0
  %342 = vmatprep.subr.bf16.mxu0 0
  %343 = vmatpush1.bf16.msra.mxu0 %v330
  %344 = vmatprep.subr.bf16.mxu0 0
  %345 = vmatpush1.bf16.msra.mxu0 %v331
  %346 = vmatprep.subr.bf16.mxu0 0
  %347 = vmatpush1.bf16.msra.mxu0 %v332
  %348 = vmatprep.subr.bf16.mxu0 0
  %349 = vmatpush1.bf16.msra.mxu0 %v333
  %350 = vmatprep.subr.bf16.mxu0 0
  %351 = vmatpush1.bf16.msra.mxu0 0
  %352 = vmatprep.subr.bf16.mxu0 0
  %353 = vmatpush1.bf16.msra.mxu0 0
  %354 = vmatprep.subr.bf16.mxu0 0
  %355 = vmatpush1.bf16.msra.mxu0 0
  %356 = vmatprep.subr.bf16.mxu0 0
  %357 = vmatpush1.bf16.msra.mxu0 0
  %358 = vmatprep.subr.bf16.mxu0 0
  %359 = vmatpush1.bf16.msra.mxu0 0
  %360 = vmatprep.subr.bf16.mxu0 0
  %361 = vmatpush1.bf16.msra.mxu0 0
  %362 = vmatprep.subr.bf16.mxu0 0
  %363 = vmatpush1.bf16.msra.mxu0 0
  %364 = vmatprep.subr.bf16.mxu0 0
  %365 = vmatpush1.bf16.msra.mxu0 0
  %366 = vmatprep.subr.bf16.mxu0 0
  %367 = vmatpush1.bf16.msra.mxu0 0
  %368 = vmatprep.subr.bf16.mxu0 0
  %369 = vmatpush1.bf16.msra.mxu0 0
  %370 = vmatprep.subr.bf16.mxu0 0
  %371 = vmatpush1.bf16.msra.mxu0 0
  %372 = vmatprep.subr.bf16.mxu0 0
  %373 = vmatpush1.bf16.msra.mxu0 0
  %374 = vmatprep.mubr.bf16.mxu0 0
  %375 = vmatmul.mubr.bf16.gmra.mrb[0].mxu0 %v340
  %v376 = vpop.f32.mrb[0].mxu0
  %v377 = vadd.f32 %v312, %v376
  %v378 = vpop.f32.mrb[0].mxu0
  %v379 = vpop.f32.mrb[0].mxu0
  %v380 = vpop.f32.mrb[0].mxu0
  %381 = vdwg.mxu0
  %v382 = vmax.f32 %v377, 0.0
  %v383 = vld [vmem:[%s7] sm:$0x1]
  %v385 = vlaneseq
  %v386 = vshrl.u32 %v385, 7
  %v387 = vsub.s32 0, %v386
  %v388 = vrot.slane %v383, %v387
  %v390 = vmul.f32 %v382, %v388
  %v391 = vsel %vm73, %v390, 0.0
  %392 = vadd.xlane.f32.xlu0 %v391
  %v393 = vpop.xlane.xlu0 %392
  %v394 = vld [vmem:[#allocation2] sm:$0x1]
  %v396 = vlaneseq
  %v397 = vshrl.u32 %v396, 7
  %v398 = vsub.s32 0, %v397
  %v399 = vrot.slane %v394, %v398
  %v401 = vadd.f32 %v393, %v399
  %vm402 = vcmask 7168
  %403 = vst.msk [vmem:[%s9] sm:$0xff] %vm402, %v401
  // Predicated region
  $region38: #{tpu_custom_call.1} parent=0 // pred_check
    _
  $region39: #{tpu_custom_call.1} parent=0 // pred_check_branch
    %405 = sbr.rel (0) target = $region41
  $region40: #{tpu_custom_call.1} parent=0 // pred_region
    _
  $region41: #{tpu_custom_call.1} parent=0 // pred_fallthru
    _
  // Predicated region
  $region42: #{tpu_custom_call.1} parent=0 // pred_check
    _
  $region43: #{tpu_custom_call.1} parent=0 // pred_check_branch
    %407 = sbr.rel (0) target = $region45
  $region44: #{tpu_custom_call.1} parent=0 // pred_region
    _
  $region45: #{tpu_custom_call.1} parent=0 // pred_fallthru
    _

</llo_original>
